<compile_context>
chip_gen: v5e
topology: v5e:2x2
jax: 0.10.0
libtpu: 0.0.40
codegen_flags: <defaults>
</compile_context>

<pallas_src>
import functools

import jax
import jax.numpy as jnp
from jax import lax
from jax.experimental import pallas as pl
from jax.experimental.pallas import tpu as pltpu

COLBERT_DIM = 128  # fixed in the torch module (self.dim = 128)


def _round_up(x, m):
    return ((x + m - 1) // m) * m


# ----------------------------------------------------------------------------
# Kernel 1: linear projection (no bias) + L2 normalize over the last dim.
#   h_ref : [tm, H]   f32 rows (flattened batch*seq)
#   w_ref : [H, 128]  bf16 projection matrix (constant block across the grid)
#   o_ref : [tm, 128] bf16 normalized embeddings
# ----------------------------------------------------------------------------
def _proj_norm_kernel(h_ref, w_ref, o_ref):
    # Cast activations to bf16 in-kernel: MXU wants bf16xbf16 (f32xf32 is a
    # multi-pass emulation), and casting here avoids an extra HBM pass that a
    # wrapper-side cast would add.
    h = h_ref[...].astype(jnp.bfloat16)
    p = jnp.dot(h, w_ref[...], preferred_element_type=jnp.float32)   # [tm,128] f32
    ssq = jnp.sum(p * p, axis=-1, keepdims=True)
    # torch F.normalize(p=2, eps=1e-12): x / max(||x||,1e-12) == x * rsqrt(max(ssq,1e-24))
    inv = lax.rsqrt(jnp.maximum(ssq, 1e-24))                          # EUP rsqrt, no divide
    o_ref[...] = (p * inv).astype(o_ref.dtype)


def project_and_normalize(h, w, *, tm=512, out_dtype=jnp.bfloat16):
    """h: [B, S, H] f32, w: [H, 128] f32 -> [B, S, 128] bf16 (L2-normalized)."""
    B, S, H = h.shape
    M = B * S
    hf = h.reshape(M, H)                      # free reshape; no pad / no HBM copy
    if M >= 8:
        tm = max(8, min(tm, (M // 8) * 8))    # sublane-aligned tile <= M
    else:
        tm = M                                # tiny case: one full block
    wb = w.astype(jnp.bfloat16)               # tiny weight, cast once
    out = pl.pallas_call(
        _proj_norm_kernel,
        out_shape=jax.ShapeDtypeStruct((M, COLBERT_DIM), out_dtype),
        grid_spec=pltpu.PrefetchScalarGridSpec(
            num_scalar_prefetch=0,
            grid=(pl.cdiv(M, tm),),           # partial last block instead of jnp.pad
            in_specs=[
                pl.BlockSpec((tm, H), lambda i: (i, 0)),
                pl.BlockSpec((H, COLBERT_DIM), lambda i: (0, 0)),   # constant block
            ],
            out_specs=pl.BlockSpec((tm, COLBERT_DIM), lambda i: (i, 0)),
        ),
        compiler_params=pltpu.CompilerParams(
            dimension_semantics=("parallel",)),
    )(hf, wb)
    return out.reshape(B, S, COLBERT_DIM)


# ----------------------------------------------------------------------------
# Kernel 2: ColBERT MaxSim score.
#   Grid: (query-tile i, doc-tile j, doc-token-chunk k)  -- k is an "arbitrary"
#   reduction axis carried by a running-max VMEM scratch.
#
#   q_ref : [tq, 128]        bf16  (tqb query batches x sqp padded tokens)
#   d_ref : [sk, 128, tdb]   bf16  (doc-token chunk; docs on lanes = MXU N side)
#   o_ref : [tqb, tdb]       f32   score block, written once at the last chunk
#   m_ref : [tq, tdb]        f32   running max over doc tokens (VMEM scratch)
#
#   score[a, b] = sum_q max_k  Q[a, q, :] . D[b, k, :]
# (== torch: matmul(Q.view(Bq,1,Sq,128), D.transpose(1,2)).max(dim=3).sum(dim=2))
# ----------------------------------------------------------------------------
def _maxsim_kernel(q_ref, d_ref, o_ref, m_ref, *, sqp, qsub):
    k = pl.program_id(2)

    @pl.when(k == 0)
    def _():
        m_ref[...] = jnp.full(m_ref.shape, -jnp.inf, dtype=m_ref.dtype)

    sk = d_ref.shape[0]
    tq = q_ref.shape[0]
    # Sub-tile the query rows so the register working set (acc + sim + q + RHS)
    # stays well under the 64-vreg file -> no spill vst on the critical path.
    for s_idx in range(tq // qsub):
        r0 = s_idx * qsub
        q_sub = q_ref[pl.ds(r0, qsub), :]                     # [qsub,128] bf16

        def body(t, acc):
            sim = jnp.dot(q_sub, d_ref[t],
                          preferred_element_type=jnp.float32)  # [qsub,tdb] f32
            return jnp.maximum(acc, sim)

        m_ref[pl.ds(r0, qsub), :] = lax.fori_loop(
            0, sk, body, m_ref[pl.ds(r0, qsub), :])

    @pl.when(k == pl.num_programs(2) - 1)
    def _():
        m = m_ref[...]                                         # [tq, tdb] f32
        tqb = tq // sqp
        # Sum over the sqp tokens of each query batch: sqp is a multiple of 8,
        # so splitting the sublane dim is layout-free and this is a cheap
        # sublane reduction (replaces the old f32 0/1 aggregation matmul).
        o_ref[...] = jnp.sum(m.reshape(tqb, sqp, m.shape[-1]), axis=1)


def maxsim_score(Q, D, *, tdb=256, sk=64, qsub=32,
                 vmem_limit_bytes=48 * 1024 * 1024):
    """Q: [Bq, Sq, 128], D: [Bd, Sd, 128] (bf16) -> [Bq, Bd] f32.

    Generation tuning: tdb=256 for v6e/v7x (256-wide MXU), tdb=128 on v5e.
    sk (doc-token chunk) ~64 keeps the double-buffered D block at ~8 MiB,
    comfortably inside v7x's 64 MiB VMEM and v5e's 16 MiB default scoped VMEM.
    """
    Bq, Sq, dim = Q.shape
    Bd, Sd, dim2 = D.shape
    assert dim == COLBERT_DIM and dim2 == COLBERT_DIM

    sqp = _round_up(Sq, 8)                        # query tokens padded (zero rows -> +0)
    tqb = max(8, _round_up(128 // sqp, 8))        # query batches per tile (tq ~128 rows)
    tq = tqb * sqp                                # always a multiple of 64
    qsub = min(qsub, tq)
    assert tq % qsub == 0
    bqp = _round_up(Bq, tqb)

    sk = max(8, min(sk, _round_up(Sd, 8)))        # doc-token chunk size
    sdp = _round_up(Sd, sk)
    bdp = _round_up(Bd, tdb)                      # docs padded to lane-dense width

    # Q: zero-pad tokens (each contributes exactly 0 to the score) and phantom
    # query batches (sliced away), then flatten to rows.
    Qp = jnp.pad(Q.astype(jnp.bfloat16), ((0, bqp - Bq), (0, sqp - Sq), (0, 0)))
    Qf = Qp.reshape(bqp * sqp, dim)

    # D: [Bd, Sd, 128] -> [Sd, 128, Bd]; docs on lanes, token index leading.
    # TODO(synk): this XLA transpose is a full HBM relayout of all doc embeddings;
    # for large Bd*Sd fold it into the doc-side projection output or chunk it.
    Dt = jnp.transpose(D.astype(jnp.bfloat16), (1, 2, 0))
    if sdp != Sd:
        # Replicate the last real token so padded token slots can never win the max.
        Dt = jnp.concatenate(
            [Dt, jnp.broadcast_to(Dt[-1:], (sdp - Sd, dim, Bd))], axis=0)
    if bdp != Bd:
        Dt = jnp.pad(Dt, ((0, 0), (0, 0), (0, bdp - Bd)))   # phantom docs sliced away

    nq = bqp // tqb
    nd = bdp // tdb
    nk = sdp // sk

    kernel = functools.partial(_maxsim_kernel, sqp=sqp, qsub=qsub)
    out = pl.pallas_call(
        kernel,
        out_shape=jax.ShapeDtypeStruct((nq * tqb, nd * tdb), jnp.float32),
        grid_spec=pltpu.PrefetchScalarGridSpec(
            num_scalar_prefetch=0,
            # Query tile outermost (small, read once from HBM), doc tile next,
            # doc-token chunk innermost (reduction; must be last so the output
            # block stays resident across it).  D is streamed nq times total,
            # and nq = ceil(Bq/tqb) is 1 for typical in-batch scoring.
            # NOTE(v7x megacore): keep nq or nd >= 2 for real workloads so both
            # TensorCores get work along a "parallel" axis.
            grid=(nq, nd, nk),
            in_specs=[
                pl.BlockSpec((tq, dim), lambda i, j, k: (i, 0)),
                pl.BlockSpec((sk, dim, tdb), lambda i, j, k: (k, 0, j)),
            ],
            out_specs=pl.BlockSpec((tqb, tdb), lambda i, j, k: (i, j)),
            scratch_shapes=[pltpu.VMEM((tq, tdb), jnp.float32)],
        ),
        compiler_params=pltpu.CompilerParams(
            dimension_semantics=("parallel", "parallel", "arbitrary"),
            vmem_limit_bytes=vmem_limit_bytes),
    )(Qf, Dt)
    return out[:Bq, :Bd]


# ----------------------------------------------------------------------------
# Stand-in "PLM" (plain JAX glue) producing last_hidden_state [B, S, H].
# ----------------------------------------------------------------------------
def _layer_norm(x, g, b, eps=1e-12):
    mu = jnp.mean(x, axis=-1, keepdims=True)
    var = jnp.var(x, axis=-1, keepdims=True)
    return (x - mu) / jnp.sqrt(var + eps) * g + b


def tiny_plm(params, input_ids, attention_mask):
    B, S = input_ids.shape
    H = params["tok_emb"].shape[1]
    x = params["tok_emb"][input_ids] + params["pos_emb"][None, :S, :]
    x = _layer_norm(x, params["ln0_g"], params["ln0_b"])
    q = x @ params["wq"]
    k = x @ params["wk"]
    v = x @ params["wv"]
    att = jnp.einsum("bqh,bkh->bqk", q, k) / jnp.sqrt(jnp.float32(H))
    att = jnp.where(attention_mask[:, None, :] > 0, att, -1e9)
    att = jax.nn.softmax(att, axis=-1)
    ctx = jnp.einsum("bqk,bkh->bqh", att, v) @ params["wo"]
    x = _layer_norm(x + ctx, params["ln1_g"], params["ln1_b"])
    ff = jax.nn.gelu(x @ params["w1"]) @ params["w2"]
    x = _layer_norm(x + ff, params["ln2_g"], params["ln2_b"])
    return x  # [B, S, H]


def init_params(key, hidden_size, vocab_size, max_pos, ff_size):
    ks = jax.random.split(key, 10)
    n = lambda k, shp: (0.02 * jax.random.normal(k, shp)).astype(jnp.float32)
    return {
        "tok_emb": n(ks[0], (vocab_size, hidden_size)),
        "pos_emb": n(ks[1], (max_pos, hidden_size)),
        "wq": n(ks[2], (hidden_size, hidden_size)),
        "wk": n(ks[3], (hidden_size, hidden_size)),
        "wv": n(ks[4], (hidden_size, hidden_size)),
        "wo": n(ks[5], (hidden_size, hidden_size)),
        "w1": n(ks[6], (hidden_size, ff_size)),
        "w2": n(ks[7], (ff_size, hidden_size)),
        "ln0_g": jnp.ones((hidden_size,), jnp.float32),
        "ln0_b": jnp.zeros((hidden_size,), jnp.float32),
        "ln1_g": jnp.ones((hidden_size,), jnp.float32),
        "ln1_b": jnp.zeros((hidden_size,), jnp.float32),
        "ln2_g": jnp.ones((hidden_size,), jnp.float32),
        "ln2_b": jnp.zeros((hidden_size,), jnp.float32),
        # nn.Linear(hidden_size, 128, bias=False): stored transposed as [H, 128].
        "proj": n(ks[8], (hidden_size, COLBERT_DIM)),
    }


# ----------------------------------------------------------------------------
# ColbertModel.forward(q_inputs, p_inputs)  (n_inputs=None path)
# ----------------------------------------------------------------------------
def colbert_forward(params, q_ids, q_mask, p_ids, p_mask):
    Qh = tiny_plm(params, q_ids, q_mask)              # last_hidden_state
    Dh = tiny_plm(params, p_ids, p_mask)
    Q = project_and_normalize(Qh, params["proj"])     # query(): linear + L2 norm (bf16)
    D = project_and_normalize(Dh, params["proj"])     # doc():   linear + L2 norm (bf16)
    return maxsim_score(Q, D)                         # get_score(): [Bq, Bd] f32


def _reference_score(Qh, Dh, W):
    # Mirrors the kernel dtype path: bf16 projection operands with f32
    # accumulation, f32 normalize, bf16 embeddings, f32 MaxSim accumulation.
    def pn(h):
        p = jnp.dot(h.astype(jnp.bfloat16), W.astype(jnp.bfloat16),
                    preferred_element_type=jnp.float32)
        n = jnp.maximum(jnp.linalg.norm(p, axis=-1, keepdims=True), 1e-12)
        return (p / n).astype(jnp.bfloat16).astype(jnp.float32)

    Q = pn(Qh)
    D = pn(Dh)
    dot = jnp.einsum("aqd,bkd->abqk", Q, D)
    return jnp.sum(jnp.max(dot, axis=3), axis=2)


if __name__ == "__main__":
    B, Sq, Sd, H = 2, 8, 8, 32
    vocab, max_pos, ff = 100, 16, 64

    root = jax.random.PRNGKey(0)
    k_par, k_q, k_p = jax.random.split(root, 3)
    params = init_params(k_par, H, vocab, max_pos, ff)

    q_ids = jax.random.randint(k_q, (B, Sq), 0, vocab, dtype=jnp.int32)
    p_ids = jax.random.randint(k_p, (B, Sd), 0, vocab, dtype=jnp.int32)
    q_mask = jnp.ones((B, Sq), jnp.float32)
    p_mask = jnp.ones((B, Sd), jnp.float32).at[1, -2:].set(0.0)

    fwd = jax.jit(colbert_forward)
    score = jax.block_until_ready(fwd(params, q_ids, q_mask, p_ids, p_mask))

    # correctness check against a pure-JAX reference of the same math
    Qh = tiny_plm(params, q_ids, q_mask)
    Dh = tiny_plm(params, p_ids, p_mask)
    ref = _reference_score(Qh, Dh, params["proj"])
    assert score.shape == (B, B)
    assert jnp.allclose(score, ref, atol=3e-2, rtol=3e-2), (score, ref)

    print("KERNEL_OK")
</pallas_src>

<mosaic_0001>
module attributes {stable_mosaic.version = 11 : i64} {
  func.func @_proj_norm_kernel(%arg0: i32, %arg1: memref<16x32xf32, #tpu.memory_space<vmem>>, %arg2: memref<32x128xbf16, #tpu.memory_space<vmem>>, %arg3: memref<16x128xbf16, #tpu.memory_space<vmem>>) attributes {dimension_semantics = [#tpu.dimension_semantics<parallel>], iteration_bounds = array<i64: 1>, scalar_prefetch = 0 : i64, scratch_operands = 0 : i64, tpu.core_type = #tpu.core_type<tc>, window_params = [{transform_indices = @transform_0, window_bounds = array<i64: 16, 32>}, {pipeline_mode = #tpu.pipeline_mode<synchronous>, transform_indices = @transform_1, window_bounds = array<i64: 32, 128>}, {transform_indices = @transform_2, window_bounds = array<i64: 16, 128>}]} {
    %c0 = arith.constant 0 : index
    %c0_0 = arith.constant 0 : index
    %0 = vector.load %arg1[%c0, %c0_0] : memref<16x32xf32, #tpu.memory_space<vmem>>, vector<16x32xf32>
    %1 = arith.truncf %0 : vector<16x32xf32> to vector<16x32xbf16>
    %c0_1 = arith.constant 0 : index
    %c0_2 = arith.constant 0 : index
    %2 = vector.load %arg2[%c0_1, %c0_2] : memref<32x128xbf16, #tpu.memory_space<vmem>>, vector<32x128xbf16>
    %cst = arith.constant dense<0.000000e+00> : vector<16x128xf32>
    %3 = tpu.matmul %1, %2, %cst {dimension_numbers = #tpu.dot_dimension_numbers<[1], [0], [0], [1], [0, 0, 1, 1], [], []>} : vector<16x32xbf16>, vector<32x128xbf16>, vector<16x128xf32> -> vector<16x128xf32>
    %4 = arith.mulf %3, %3 : vector<16x128xf32>
    %cst_3 = arith.constant dense<0.000000e+00> : vector<16xf32>
    %5 = vector.multi_reduction <add>, %4, %cst_3 [1] : vector<16x128xf32> to vector<16xf32>
    %6 = vector.shape_cast %5 : vector<16xf32> to vector<16x1xf32>
    %cst_4 = arith.constant 1.000000e-24 : f32
    %7 = vector.broadcast %cst_4 : f32 to vector<16x1xf32>
    %8 = arith.maximumf %6, %7 : vector<16x1xf32>
    %9 = math.rsqrt %8 : vector<16x1xf32>
    %10 = vector.broadcast %9 : vector<16x1xf32> to vector<16x128xf32>
    %11 = arith.mulf %3, %10 : vector<16x128xf32>
    %12 = arith.truncf %11 : vector<16x128xf32> to vector<16x128xbf16>
    %c0_5 = arith.constant 0 : index
    %c0_6 = arith.constant 0 : index
    %13 = vector.load %arg3[%c0_5, %c0_6] : memref<16x128xbf16, #tpu.memory_space<vmem>>, vector<16x128xbf16>
    tpu.vector_store %arg3[%c0_5, %c0_6], %12 {strides = array<i32>} : memref<16x128xbf16, #tpu.memory_space<vmem>>, vector<16x128xbf16>,
    return
  }
  func.func @transform_0(%arg0: i32) -> (i32, i32) {
    %c0_i32 = arith.constant 0 : i32
    %c0_i32_0 = arith.constant 0 : i32
    return %arg0, %c0_i32 : i32, i32
  }
  func.func @transform_1(%arg0: i32) -> (i32, i32) {
    %c0_i32 = arith.constant 0 : i32
    %c0_i32_0 = arith.constant 0 : i32
    %c0_i32_1 = arith.constant 0 : i32
    return %c0_i32, %c0_i32_0 : i32, i32
  }
  func.func @transform_2(%arg0: i32) -> (i32, i32) {
    %c0_i32 = arith.constant 0 : i32
    %c0_i32_0 = arith.constant 0 : i32
    return %arg0, %c0_i32 : i32, i32
  }
}

module attributes {stable_mosaic.version = 11 : i64} {
  func.func @_maxsim_kernel(%arg0: i32, %arg1: i32, %arg2: i32, %arg3: memref<128x128xbf16, #tpu.memory_space<vmem>>, %arg4: memref<8x128x256xbf16, #tpu.memory_space<vmem>>, %arg5: memref<16x256xf32, #tpu.memory_space<vmem>>, %arg6: memref<128x256xf32, #tpu.memory_space<vmem>>) attributes {dimension_semantics = [#tpu.dimension_semantics<parallel>, #tpu.dimension_semantics<parallel>, #tpu.dimension_semantics<arbitrary>], iteration_bounds = array<i64: 1, 1, 1>, scalar_prefetch = 0 : i64, scratch_operands = 1 : i64, tpu.core_type = #tpu.core_type<tc>, window_params = [{transform_indices = @transform_0, window_bounds = array<i64: 128, 128>}, {transform_indices = @transform_1, window_bounds = array<i64: 8, 128, 256>}, {transform_indices = @transform_2, window_bounds = array<i64: 16, 256>}]} {
    %c0_i32 = arith.constant 0 : i32
    %0 = arith.cmpi eq, %arg2, %c0_i32 : i32
    %1 = arith.extui %0 : i1 to i32
    %c0_i32_0 = arith.constant 0 : i32
    %2 = arith.cmpi ne, %1, %c0_i32_0 : i32
    scf.if %2 {
      %cst = arith.constant 0xFF800000 : f32
      %26 = vector.broadcast %cst : f32 to vector<128x256xf32>
      %c0_37 = arith.constant 0 : index
      %c0_38 = arith.constant 0 : index
      %27 = vector.load %arg6[%c0_37, %c0_38] : memref<128x256xf32, #tpu.memory_space<vmem>>, vector<128x256xf32>
      tpu.vector_store %arg6[%c0_37, %c0_38], %26 {strides = array<i32>} : memref<128x256xf32, #tpu.memory_space<vmem>>, vector<128x256xf32>,
    } else {
    }
    %c0 = arith.constant 0 : index
    %c0_1 = arith.constant 0 : index
    %3 = vector.load %arg3[%c0, %c0_1] : memref<128x128xbf16, #tpu.memory_space<vmem>>, vector<32x128xbf16>
    %c0_2 = arith.constant 0 : index
    %c0_3 = arith.constant 0 : index
    %4 = vector.load %arg6[%c0_2, %c0_3] : memref<128x256xf32, #tpu.memory_space<vmem>>, vector<32x256xf32>
    %c0_i32_4 = arith.constant 0 : i32
    %c8_i32 = arith.constant 8 : i32
    %5 = arith.addi %c0_i32_4, %c8_i32 : i32
    %c1_i32 = arith.constant 1 : i32
    %6 = scf.for %arg7 = %c0_i32_4 to %5 step %c1_i32 iter_args(%arg8 = %4) -> (vector<32x256xf32>)  : i32 {
      %26 = arith.index_cast %arg7 : i32 to index
      %c0_37 = arith.constant 0 : index
      %c0_38 = arith.constant 0 : index
      %27 = vector.load %arg4[%26, %c0_37, %c0_38] : memref<8x128x256xbf16, #tpu.memory_space<vmem>>, vector<1x128x256xbf16>
      %28 = vector.shape_cast %27 : vector<1x128x256xbf16> to vector<128x256xbf16>
      %cst = arith.constant dense<0.000000e+00> : vector<32x256xf32>
      %29 = tpu.matmul %3, %28, %cst {dimension_numbers = #tpu.dot_dimension_numbers<[1], [0], [0], [1], [0, 0, 1, 1], [], []>} : vector<32x128xbf16>, vector<128x256xbf16>, vector<32x256xf32> -> vector<32x256xf32>
      %30 = arith.maximumf %arg8, %29 : vector<32x256xf32>
      scf.yield %30 : vector<32x256xf32>
    }
    %c8_i32_5 = arith.constant 8 : i32
    %c0_6 = arith.constant 0 : index
    %c0_7 = arith.constant 0 : index
    %7 = vector.load %arg6[%c0_6, %c0_7] : memref<128x256xf32, #tpu.memory_space<vmem>>, vector<32x256xf32>
    tpu.vector_store %arg6[%c0_6, %c0_7], %6 {strides = array<i32>} : memref<128x256xf32, #tpu.memory_space<vmem>>, vector<32x256xf32>,
    %c32 = arith.constant 32 : index
    %c0_8 = arith.constant 0 : index
    %8 = vector.load %arg3[%c32, %c0_8] : memref<128x128xbf16, #tpu.memory_space<vmem>>, vector<32x128xbf16>
    %c32_9 = arith.constant 32 : index
    %c0_10 = arith.constant 0 : index
    %9 = vector.load %arg6[%c32_9, %c0_10] : memref<128x256xf32, #tpu.memory_space<vmem>>, vector<32x256xf32>
    %c0_i32_11 = arith.constant 0 : i32
    %c8_i32_12 = arith.constant 8 : i32
    %10 = arith.addi %c0_i32_11, %c8_i32_12 : i32
    %c1_i32_13 = arith.constant 1 : i32
    %11 = scf.for %arg7 = %c0_i32_11 to %10 step %c1_i32_13 iter_args(%arg8 = %9) -> (vector<32x256xf32>)  : i32 {
      %26 = arith.index_cast %arg7 : i32 to index
      %c0_37 = arith.constant 0 : index
      %c0_38 = arith.constant 0 : index
      %27 = vector.load %arg4[%26, %c0_37, %c0_38] : memref<8x128x256xbf16, #tpu.memory_space<vmem>>, vector<1x128x256xbf16>
      %28 = vector.shape_cast %27 : vector<1x128x256xbf16> to vector<128x256xbf16>
      %cst = arith.constant dense<0.000000e+00> : vector<32x256xf32>
      %29 = tpu.matmul %8, %28, %cst {dimension_numbers = #tpu.dot_dimension_numbers<[1], [0], [0], [1], [0, 0, 1, 1], [], []>} : vector<32x128xbf16>, vector<128x256xbf16>, vector<32x256xf32> -> vector<32x256xf32>
      %30 = arith.maximumf %arg8, %29 : vector<32x256xf32>
      scf.yield %30 : vector<32x256xf32>
    }
    %c8_i32_14 = arith.constant 8 : i32
    %c32_15 = arith.constant 32 : index
    %c0_16 = arith.constant 0 : index
    %12 = vector.load %arg6[%c32_15, %c0_16] : memref<128x256xf32, #tpu.memory_space<vmem>>, vector<32x256xf32>
    tpu.vector_store %arg6[%c32_15, %c0_16], %11 {strides = array<i32>} : memref<128x256xf32, #tpu.memory_space<vmem>>, vector<32x256xf32>,
    %c64 = arith.constant 64 : index
    %c0_17 = arith.constant 0 : index
    %13 = vector.load %arg3[%c64, %c0_17] : memref<128x128xbf16, #tpu.memory_space<vmem>>, vector<32x128xbf16>
    %c64_18 = arith.constant 64 : index
    %c0_19 = arith.constant 0 : index
    %14 = vector.load %arg6[%c64_18, %c0_19] : memref<128x256xf32, #tpu.memory_space<vmem>>, vector<32x256xf32>
    %c0_i32_20 = arith.constant 0 : i32
    %c8_i32_21 = arith.constant 8 : i32
    %15 = arith.addi %c0_i32_20, %c8_i32_21 : i32
    %c1_i32_22 = arith.constant 1 : i32
    %16 = scf.for %arg7 = %c0_i32_20 to %15 step %c1_i32_22 iter_args(%arg8 = %14) -> (vector<32x256xf32>)  : i32 {
      %26 = arith.index_cast %arg7 : i32 to index
      %c0_37 = arith.constant 0 : index
      %c0_38 = arith.constant 0 : index
      %27 = vector.load %arg4[%26, %c0_37, %c0_38] : memref<8x128x256xbf16, #tpu.memory_space<vmem>>, vector<1x128x256xbf16>
      %28 = vector.shape_cast %27 : vector<1x128x256xbf16> to vector<128x256xbf16>
      %cst = arith.constant dense<0.000000e+00> : vector<32x256xf32>
      %29 = tpu.matmul %13, %28, %cst {dimension_numbers = #tpu.dot_dimension_numbers<[1], [0], [0], [1], [0, 0, 1, 1], [], []>} : vector<32x128xbf16>, vector<128x256xbf16>, vector<32x256xf32> -> vector<32x256xf32>
      %30 = arith.maximumf %arg8, %29 : vector<32x256xf32>
      scf.yield %30 : vector<32x256xf32>
    }
    %c8_i32_23 = arith.constant 8 : i32
    %c64_24 = arith.constant 64 : index
    %c0_25 = arith.constant 0 : index
    %17 = vector.load %arg6[%c64_24, %c0_25] : memref<128x256xf32, #tpu.memory_space<vmem>>, vector<32x256xf32>
    tpu.vector_store %arg6[%c64_24, %c0_25], %16 {strides = array<i32>} : memref<128x256xf32, #tpu.memory_space<vmem>>, vector<32x256xf32>,
    %c96 = arith.constant 96 : index
    %c0_26 = arith.constant 0 : index
    %18 = vector.load %arg3[%c96, %c0_26] : memref<128x128xbf16, #tpu.memory_space<vmem>>, vector<32x128xbf16>
    %c96_27 = arith.constant 96 : index
    %c0_28 = arith.constant 0 : index
    %19 = vector.load %arg6[%c96_27, %c0_28] : memref<128x256xf32, #tpu.memory_space<vmem>>, vector<32x256xf32>
    %c0_i32_29 = arith.constant 0 : i32
    %c8_i32_30 = arith.constant 8 : i32
    %20 = arith.addi %c0_i32_29, %c8_i32_30 : i32
    %c1_i32_31 = arith.constant 1 : i32
    %21 = scf.for %arg7 = %c0_i32_29 to %20 step %c1_i32_31 iter_args(%arg8 = %19) -> (vector<32x256xf32>)  : i32 {
      %26 = arith.index_cast %arg7 : i32 to index
      %c0_37 = arith.constant 0 : index
      %c0_38 = arith.constant 0 : index
      %27 = vector.load %arg4[%26, %c0_37, %c0_38] : memref<8x128x256xbf16, #tpu.memory_space<vmem>>, vector<1x128x256xbf16>
      %28 = vector.shape_cast %27 : vector<1x128x256xbf16> to vector<128x256xbf16>
      %cst = arith.constant dense<0.000000e+00> : vector<32x256xf32>
      %29 = tpu.matmul %18, %28, %cst {dimension_numbers = #tpu.dot_dimension_numbers<[1], [0], [0], [1], [0, 0, 1, 1], [], []>} : vector<32x128xbf16>, vector<128x256xbf16>, vector<32x256xf32> -> vector<32x256xf32>
      %30 = arith.maximumf %arg8, %29 : vector<32x256xf32>
      scf.yield %30 : vector<32x256xf32>
    }
    %c8_i32_32 = arith.constant 8 : i32
    %c96_33 = arith.constant 96 : index
    %c0_34 = arith.constant 0 : index
    %22 = vector.load %arg6[%c96_33, %c0_34] : memref<128x256xf32, #tpu.memory_space<vmem>>, vector<32x256xf32>
    tpu.vector_store %arg6[%c96_33, %c0_34], %21 {strides = array<i32>} : memref<128x256xf32, #tpu.memory_space<vmem>>, vector<32x256xf32>,
    %c0_i32_35 = arith.constant 0 : i32
    %23 = arith.cmpi eq, %arg2, %c0_i32_35 : i32
    %24 = arith.extui %23 : i1 to i32
    %c0_i32_36 = arith.constant 0 : i32
    %25 = arith.cmpi ne, %24, %c0_i32_36 : i32
    scf.if %25 {
      %c0_37 = arith.constant 0 : index
      %c0_38 = arith.constant 0 : index
      %26 = vector.load %arg6[%c0_37, %c0_38] : memref<128x256xf32, #tpu.memory_space<vmem>>, vector<128x256xf32>
      %27 = vector.shape_cast %26 : vector<128x256xf32> to vector<16x8x256xf32>
      %cst = arith.constant dense<0.000000e+00> : vector<16x256xf32>
      %28 = vector.multi_reduction <add>, %27, %cst [1] : vector<16x8x256xf32> to vector<16x256xf32>
      %c0_39 = arith.constant 0 : index
      %c0_40 = arith.constant 0 : index
      %29 = vector.load %arg5[%c0_39, %c0_40] : memref<16x256xf32, #tpu.memory_space<vmem>>, vector<16x256xf32>
      tpu.vector_store %arg5[%c0_39, %c0_40], %28 {strides = array<i32>} : memref<16x256xf32, #tpu.memory_space<vmem>>, vector<16x256xf32>,
    } else {
    }
    return
  }
  func.func @transform_0(%arg0: i32, %arg1: i32, %arg2: i32) -> (i32, i32) {
    %c0_i32 = arith.constant 0 : i32
    %c0_i32_0 = arith.constant 0 : i32
    return %arg0, %c0_i32 : i32, i32
  }
  func.func @transform_1(%arg0: i32, %arg1: i32, %arg2: i32) -> (i32, i32, i32) {
    %c0_i32 = arith.constant 0 : i32
    %c0_i32_0 = arith.constant 0 : i32
    return %arg2, %c0_i32, %arg1 : i32, i32, i32
  }
  func.func @transform_2(%arg0: i32, %arg1: i32, %arg2: i32) -> (i32, i32) {
    %c0_i32 = arith.constant 0 : i32
    return %arg0, %arg1 : i32, i32
  }
}

</mosaic_0001>

<llo_original>
// kernel: colbert_forward.4
$region0: #{colbert_forward.4}
  #allocation0 [shape = 'u32[]', space=smem, size = 0x4, offset = 0x4, fixed_abs, tag = 'smem constant byte address 0x4 - core index']
  #allocation1 [shape = 'u32[72,128]{1,0:T(1,128)}', space=vmem, size = 0x9000, scoped, tag = 'internal scratch']
  %s0 = inlined_call_operand.vmem [shape: f32[16,32], index: 0, kind: input, shape index: {}]
  %s1 = inlined_call_operand.vmem [shape: bf16[32,128], index: 1, kind: input, shape index: {}]
  %s2 = inlined_call_operand.vmem [shape: bf16[16,128], index: 2, kind: output, shape index: {}]
  %s3 = sld [smem:[#allocation0]]
  $region18: #{colbert_forward.4} parent=0
    _
  %s5 = ssub.s32 1, %s3
  %s6 = scalar_select 0, %s5, %s3
  // Predicated region
  $region2: #{colbert_forward.4} parent=0 // pred_check
    _
  $region3: #{colbert_forward.4} parent=0 // pred_check_branch
    %8 = sbr.rel (0) target = $region5
  $region4: #{colbert_forward.4} parent=0 // pred_region
    _
  $region5: #{colbert_forward.4} parent=0 // pred_fallthru
    _
  // Predicated region
  $region6: #{colbert_forward.4} parent=0 // pred_check
    _
  $region7: #{colbert_forward.4} parent=0 // pred_check_branch
    %10 = sbr.rel (0) target = $region9
  $region8: #{colbert_forward.4} parent=0 // pred_region
    _
  $region9: #{colbert_forward.4} parent=0 // pred_fallthru
    _
  %v12 = vld [vmem:[%s0] sm:$0xff]
  %v13 = vld [vmem:[%s0 + $0x8] sm:$0xff]
  %v14 = vpack.c.bf16 %v13, %v12
  %v15 = vld [vmem:[%s1] sm:$0xf]
  %v16 = vld [vmem:[%s1 + $0x4] sm:$0xf]
  %v17 = vld [vmem:[%s1 + $0x8] sm:$0xf]
  %v18 = vld [vmem:[%s1 + $0xc] sm:$0xf]
  %v23 = vunpack.c.l.b16 %v15
  %v24 = vunpack.c.l.b16 %v16
  %v25 = vunpack.c.l.b16 %v17
  %v26 = vunpack.c.l.b16 %v18
  %v27 = vpack.c.b16 %v24, %v23
  %v28 = vpack.c.b16 %v26, %v25
  %vm31 = vcmask 261120
  %v33 = vsel %vm31, %v14, 0
  %35 = vmatpush.bf16.msra.mxu0 0
  %36 = vmatpush.bf16.msra.mxu0 0
  %37 = vmatpush.bf16.msra.mxu0 0
  %38 = vmatpush.bf16.msra.mxu0 0
  %39 = vmatpush.bf16.msra.mxu0 0
  %40 = vmatpush.bf16.msra.mxu0 0
  %41 = vmatpush.bf16.msra.mxu0 %v28
  %42 = vmatpush.bf16.msra.mxu0 %v27
  %43 = vmatmul.bf16.gmra.mxu0 %v33
  %v44 = vpop.f32.mrf.mxu0
  %v45 = vadd.f32 0.0, %v44
  %v46 = vpop.f32.mrf.mxu0
  %v47 = vadd.f32 0.0, %v46
  %48 = vdwg.mxu0
  %v49 = vmul.f32 %v45, %v45
  %v50 = vmul.f32 %v47, %v47
  %51 = vadd.xlane.f32.xlu0 %v49
  %v52 = vpop.xlane.xlu0 %51
  %53 = vadd.xlane.f32.xlu0 %v50
  %v54 = vpop.xlane.xlu0 %53
  %v55 = vmax.f32 %v52, 1e-24
  %v56 = vmax.f32 %v54, 1e-24
  %v57 = vrsqrt.pop %v55
  %v58 = vmul.f32 %v57, %v55
  %v59 = vmul.f32 %v58, %v57
  %v60 = vmul.f32 0.5, %v59
  %v61 = vsub.f32 1.5, %v60
  %v62 = vmul.f32 %v57, %v61
  %vm63 = vweird.f32 %v55
  %vm64 = vweird.f32 %v57
  %vm65 = vmor %vm63, %vm64
  %v66 = vsel %vm65, %v57, %v62
  %v67 = vrsqrt.pop %v56
  %v68 = vmul.f32 %v67, %v56
  %v69 = vmul.f32 %v68, %v67
  %v70 = vmul.f32 0.5, %v69
  %v71 = vsub.f32 1.5, %v70
  %v72 = vmul.f32 %v67, %v71
  %vm73 = vweird.f32 %v56
  %vm74 = vweird.f32 %v67
  %vm75 = vmor %vm73, %vm74
  %v76 = vsel %vm75, %v67, %v72
  %v77 = vmul.f32 %v45, %v66
  %v78 = vmul.f32 %v47, %v76
  %v79 = vpack.c.bf16 %v77, %v77
  %v80 = vpack.c.bf16 %v78, %v78
  %81 = vst [vmem:[%s2] sm:$0xf] %v79
  %82 = vst [vmem:[%s2 + $0x4] sm:$0xf] %v80
  // Predicated region
  $region10: #{colbert_forward.4} parent=0 // pred_check
    _
  $region11: #{colbert_forward.4} parent=0 // pred_check_branch
    %84 = sbr.rel (0) target = $region13
  $region12: #{colbert_forward.4} parent=0 // pred_region
    _
  $region13: #{colbert_forward.4} parent=0 // pred_fallthru
    _
  // Predicated region
  $region14: #{colbert_forward.4} parent=0 // pred_check
    _
  $region15: #{colbert_forward.4} parent=0 // pred_check_branch
    %86 = sbr.rel (0) target = $region17
  $region16: #{colbert_forward.4} parent=0 // pred_region
    _
  $region17: #{colbert_forward.4} parent=0 // pred_fallthru
    _

// kernel: colbert_forward.5
$region0: #{colbert_forward.5}
  #allocation0 [shape = 'u32[]', space=smem, size = 0x4, offset = 0x4, fixed_abs, tag = 'smem constant byte address 0x4 - core index']
  #allocation1 [shape = 'u32[72,128]{1,0:T(1,128)}', space=vmem, size = 0x9000, scoped, tag = 'internal scratch']
  #allocation2 [shape = 'f32[128,256]{1,0:T(8,128)}', space=vmem, size = 0x20000, scoped, tag = 'scratch operand']
  %s0 = inlined_call_operand.vmem [shape: bf16[128,128], index: 0, kind: input, shape index: {}]
  %s1 = inlined_call_operand.vmem [shape: bf16[8,128,256], index: 1, kind: input, shape index: {}]
  %s2 = inlined_call_operand.vmem [shape: f32[16,256], index: 2, kind: output, shape index: {}]
  %s3 = sld [smem:[#allocation0]]
  $region54: #{colbert_forward.5} parent=0
    _
  %s5 = ssub.s32 1, %s3
  %s6 = scalar_select 0, %s5, %s3
  // Predicated region
  $region2: #{colbert_forward.5} parent=0 // pred_check
    _
  $region3: #{colbert_forward.5} parent=0 // pred_check_branch
    %8 = sbr.rel (0) target = $region5
  $region4: #{colbert_forward.5} parent=0 // pred_region
    _
  $region5: #{colbert_forward.5} parent=0 // pred_fallthru
    _
  // Predicated region
  $region6: #{colbert_forward.5} parent=0 // pred_check
    _
  $region7: #{colbert_forward.5} parent=0 // pred_check_branch
    %10 = sbr.rel (0) target = $region9
  $region8: #{colbert_forward.5} parent=0 // pred_region
    _
  $region9: #{colbert_forward.5} parent=0 // pred_fallthru
    _
  %p11 = scmp.eq.s32.totalorder 0, 0
  // Predicated region
  $region10: #{colbert_forward.5} parent=0 // pred_check
    %p12 = pneg %p11
  $region11: #{colbert_forward.5} parent=0 // pred_check_branch
    %14 = sbr.rel (%p12) target = $region13
  $region12: #{colbert_forward.5} parent=0 // pred_region
    %15 = vst [vmem:[#allocation2] sm:$0xff] -inf
    %16 = vst [vmem:[#allocation2 + $0x8] sm:$0xff] -inf
    %17 = vst [vmem:[#allocation2 + $0x10] sm:$0xff] -inf
    %18 = vst [vmem:[#allocation2 + $0x18] sm:$0xff] -inf
    %19 = vst [vmem:[#allocation2 + $0x20] sm:$0xff] -inf
    %20 = vst [vmem:[#allocation2 + $0x28] sm:$0xff] -inf
    %21 = vst [vmem:[#allocation2 + $0x30] sm:$0xff] -inf
    %22 = vst [vmem:[#allocation2 + $0x38] sm:$0xff] -inf
    %23 = vst [vmem:[#allocation2 + $0x40] sm:$0xff] -inf
    %24 = vst [vmem:[#allocation2 + $0x48] sm:$0xff] -inf
    %25 = vst [vmem:[#allocation2 + $0x50] sm:$0xff] -inf
    %26 = vst [vmem:[#allocation2 + $0x58] sm:$0xff] -inf
    %27 = vst [vmem:[#allocation2 + $0x60] sm:$0xff] -inf
    %28 = vst [vmem:[#allocation2 + $0x68] sm:$0xff] -inf
    %29 = vst [vmem:[#allocation2 + $0x70] sm:$0xff] -inf
    %30 = vst [vmem:[#allocation2 + $0x78] sm:$0xff] -inf
    %31 = vst [vmem:[#allocation2 + $0x80] sm:$0xff] -inf
    %32 = vst [vmem:[#allocation2 + $0x88] sm:$0xff] -inf
    %33 = vst [vmem:[#allocation2 + $0x90] sm:$0xff] -inf
    %34 = vst [vmem:[#allocation2 + $0x98] sm:$0xff] -inf
    %35 = vst [vmem:[#allocation2 + $0xa0] sm:$0xff] -inf
    %36 = vst [vmem:[#allocation2 + $0xa8] sm:$0xff] -inf
    %37 = vst [vmem:[#allocation2 + $0xb0] sm:$0xff] -inf
    %38 = vst [vmem:[#allocation2 + $0xb8] sm:$0xff] -inf
    %39 = vst [vmem:[#allocation2 + $0xc0] sm:$0xff] -inf
    %40 = vst [vmem:[#allocation2 + $0xc8] sm:$0xff] -inf
    %41 = vst [vmem:[#allocation2 + $0xd0] sm:$0xff] -inf
    %42 = vst [vmem:[#allocation2 + $0xd8] sm:$0xff] -inf
    %43 = vst [vmem:[#allocation2 + $0xe0] sm:$0xff] -inf
    %44 = vst [vmem:[#allocation2 + $0xe8] sm:$0xff] -inf
    %45 = vst [vmem:[#allocation2 + $0xf0] sm:$0xff] -inf
    %46 = vst [vmem:[#allocation2 + $0xf8] sm:$0xff] -inf
  $region13: #{colbert_forward.5} parent=0 // pred_fallthru
    _
  %v47 = vld [vmem:[%s0] sm:$0xf]
  %v48 = vld [vmem:[%s0 + $0x4] sm:$0xf]
  %v49 = vld [vmem:[%s0 + $0x8] sm:$0xf]
  %v50 = vld [vmem:[%s0 + $0xc] sm:$0xf]
  %v51 = vld [vmem:[#allocation2] sm:$0xff]
  %v52 = vld [vmem:[#allocation2 + $0x8] sm:$0xff]
  %v53 = vld [vmem:[#allocation2 + $0x10] sm:$0xff]
  %v54 = vld [vmem:[#allocation2 + $0x18] sm:$0xff]
  %v55 = vld [vmem:[#allocation2 + $0x20] sm:$0xff]
  %v56 = vld [vmem:[#allocation2 + $0x28] sm:$0xff]
  %v57 = vld [vmem:[#allocation2 + $0x30] sm:$0xff]
  %v58 = vld [vmem:[#allocation2 + $0x38] sm:$0xff]
  loop: start=0, step=1, limit=8
  $region14: #{colbert_forward.5} parent=0 // loop_pre_header
    _
  $region15: #{colbert_forward.5} parent=0 // loop_header
    %s60 = sphi 0, %s64
    %p61 = scmp.ge.s32.totalorder %s60, 8
    %v65 = vphi %v51, %v222
    %v66 = vphi %v52, %v223
    %v67 = vphi %v53, %v224
    %v68 = vphi %v54, %v225
    %v69 = vphi %v55, %v226
    %v70 = vphi %v56, %v227
    %v71 = vphi %v57, %v228
    %v72 = vphi %v58, %v229
  $region16: #{colbert_forward.5} parent=0 // loop_header_branch
    %63 = sbr.rel (%p61) target = $region20
  $region17: #{colbert_forward.5} parent=0 // loop_body
    %s73 = smul.u32 %s60, 32
    %s74 = smul.addr %s73, 4
    %s75 = scalar_lea.vmem %s1, %s74
    %v76 = vld [vmem:[%s75] sm:$0xff]
    %v77 = vld [vmem:[%s75 + $0x8] sm:$0xff]
    %v78 = vld [vmem:[%s75 + $0x10] sm:$0xff]
    %v79 = vld [vmem:[%s75 + $0x18] sm:$0xff]
    %v80 = vld [vmem:[%s75 + $0x20] sm:$0xff]
    %v81 = vld [vmem:[%s75 + $0x28] sm:$0xff]
    %v82 = vld [vmem:[%s75 + $0x30] sm:$0xff]
    %v83 = vld [vmem:[%s75 + $0x38] sm:$0xff]
    %v84 = vld [vmem:[%s75 + $0x40] sm:$0xff]
    %v85 = vld [vmem:[%s75 + $0x48] sm:$0xff]
    %v86 = vld [vmem:[%s75 + $0x50] sm:$0xff]
    %v87 = vld [vmem:[%s75 + $0x58] sm:$0xff]
    %v88 = vld [vmem:[%s75 + $0x60] sm:$0xff]
    %v89 = vld [vmem:[%s75 + $0x68] sm:$0xff]
    %v90 = vld [vmem:[%s75 + $0x70] sm:$0xff]
    %v91 = vld [vmem:[%s75 + $0x78] sm:$0xff]
    %v96 = vunpack.c.l.b16 %v47
    %v97 = vunpack.c.l.b16 %v48
    %v98 = vunpack.c.l.b16 %v49
    %v99 = vunpack.c.l.b16 %v50
    %v100 = vpack.c.b16 %v97, %v96
    %v101 = vpack.c.b16 %v99, %v98
    %v120 = vunpack.c.l.b16 %v76
    %v121 = vunpack.c.h.b16 %v76
    %v122 = vunpack.c.l.b16 %v77
    %v123 = vunpack.c.h.b16 %v77
    %v124 = vunpack.c.l.b16 %v78
    %v125 = vunpack.c.h.b16 %v78
    %v126 = vunpack.c.l.b16 %v79
    %v127 = vunpack.c.h.b16 %v79
    %v128 = vunpack.c.l.b16 %v80
    %v129 = vunpack.c.h.b16 %v80
    %v130 = vunpack.c.l.b16 %v81
    %v131 = vunpack.c.h.b16 %v81
    %v132 = vunpack.c.l.b16 %v82
    %v133 = vunpack.c.h.b16 %v82
    %v134 = vunpack.c.l.b16 %v83
    %v135 = vunpack.c.h.b16 %v83
    %v136 = vunpack.c.l.b16 %v84
    %v137 = vunpack.c.h.b16 %v84
    %v138 = vunpack.c.l.b16 %v85
    %v139 = vunpack.c.h.b16 %v85
    %v140 = vunpack.c.l.b16 %v86
    %v141 = vunpack.c.h.b16 %v86
    %v142 = vunpack.c.l.b16 %v87
    %v143 = vunpack.c.h.b16 %v87
    %v144 = vunpack.c.l.b16 %v88
    %v145 = vunpack.c.h.b16 %v88
    %v146 = vunpack.c.l.b16 %v89
    %v147 = vunpack.c.h.b16 %v89
    %v148 = vunpack.c.l.b16 %v90
    %v149 = vunpack.c.h.b16 %v90
    %v150 = vunpack.c.l.b16 %v91
    %v151 = vunpack.c.h.b16 %v91
    %v152 = vpack.c.b16 %v122, %v120
    %v153 = vpack.c.b16 %v123, %v121
    %v154 = vpack.c.b16 %v126, %v124
    %v155 = vpack.c.b16 %v127, %v125
    %v156 = vpack.c.b16 %v130, %v128
    %v157 = vpack.c.b16 %v131, %v129
    %v158 = vpack.c.b16 %v134, %v132
    %v159 = vpack.c.b16 %v135, %v133
    %v160 = vpack.c.b16 %v138, %v136
    %v161 = vpack.c.b16 %v139, %v137
    %v162 = vpack.c.b16 %v142, %v140
    %v163 = vpack.c.b16 %v143, %v141
    %v164 = vpack.c.b16 %v146, %v144
    %v165 = vpack.c.b16 %v147, %v145
    %v166 = vpack.c.b16 %v150, %v148
    %v167 = vpack.c.b16 %v151, %v149
    %184 = vmatpush.bf16.msra.mxu0 %v166
    %185 = vmatpush.bf16.msra.mxu0 %v164
    %186 = vmatpush.bf16.msra.mxu0 %v162
    %187 = vmatpush.bf16.msra.mxu0 %v160
    %188 = vmatpush.bf16.msra.mxu0 %v158
    %189 = vmatpush.bf16.msra.mxu0 %v156
    %190 = vmatpush.bf16.msra.mxu0 %v154
    %191 = vmatpush.bf16.msra.mxu0 %v152
    %192 = vmatmul.bf16.gmra.mxu0 %v100
    %v193 = vpop.f32.mrf.mxu0
    %v194 = vadd.f32 0.0, %v193
    %v195 = vpop.f32.mrf.mxu0
    %v196 = vadd.f32 0.0, %v195
    %197 = vmatmul.bf16.gmra.mxu0 %v101
    %v198 = vpop.f32.mrf.mxu0
    %v199 = vadd.f32 0.0, %v198
    %v200 = vpop.f32.mrf.mxu0
    %v201 = vadd.f32 0.0, %v200
    %202 = vdwg.mxu0
    %203 = vmatpush.bf16.msra.mxu0 %v167
    %204 = vmatpush.bf16.msra.mxu0 %v165
    %205 = vmatpush.bf16.msra.mxu0 %v163
    %206 = vmatpush.bf16.msra.mxu0 %v161
    %207 = vmatpush.bf16.msra.mxu0 %v159
    %208 = vmatpush.bf16.msra.mxu0 %v157
    %209 = vmatpush.bf16.msra.mxu0 %v155
    %210 = vmatpush.bf16.msra.mxu0 %v153
    %211 = vmatmul.bf16.gmra.mxu0 %v100
    %v212 = vpop.f32.mrf.mxu0
    %v213 = vadd.f32 0.0, %v212
    %v214 = vpop.f32.mrf.mxu0
    %v215 = vadd.f32 0.0, %v214
    %216 = vmatmul.bf16.gmra.mxu0 %v101
    %v217 = vpop.f32.mrf.mxu0
    %v218 = vadd.f32 0.0, %v217
    %v219 = vpop.f32.mrf.mxu0
    %v220 = vadd.f32 0.0, %v219
    %221 = vdwg.mxu0
    %v222 = vmax.f32 %v65, %v194
    %v223 = vmax.f32 %v66, %v213
    %v224 = vmax.f32 %v67, %v196
    %v225 = vmax.f32 %v68, %v215
    %v226 = vmax.f32 %v69, %v199
    %v227 = vmax.f32 %v70, %v218
    %v228 = vmax.f32 %v71, %v201
    %v229 = vmax.f32 %v72, %v220
  $region18: #{colbert_forward.5} parent=0 // loop_footer
    %s64 = sadd.s32 1, %s60
  $region19: #{colbert_forward.5} parent=0 // loop_footer_branch
    %59 = sbr.rel target = $region15
  $region20: #{colbert_forward.5} parent=0 // loop_exit
    _
  %230 = vst [vmem:[#allocation2] sm:$0xff] %v65
  %231 = vst [vmem:[#allocation2 + $0x8] sm:$0xff] %v66
  %232 = vst [vmem:[#allocation2 + $0x10] sm:$0xff] %v67
  %233 = vst [vmem:[#allocation2 + $0x18] sm:$0xff] %v68
  %234 = vst [vmem:[#allocation2 + $0x20] sm:$0xff] %v69
  %235 = vst [vmem:[#allocation2 + $0x28] sm:$0xff] %v70
  %236 = vst [vmem:[#allocation2 + $0x30] sm:$0xff] %v71
  %237 = vst [vmem:[#allocation2 + $0x38] sm:$0xff] %v72
  %v238 = vld [vmem:[%s0 + $0x10] sm:$0xf]
  %v239 = vld [vmem:[%s0 + $0x14] sm:$0xf]
  %v240 = vld [vmem:[%s0 + $0x18] sm:$0xf]
  %v241 = vld [vmem:[%s0 + $0x1c] sm:$0xf]
  %v242 = vld [vmem:[#allocation2 + $0x40] sm:$0xff]
  %v243 = vld [vmem:[#allocation2 + $0x48] sm:$0xff]
  %v244 = vld [vmem:[#allocation2 + $0x50] sm:$0xff]
  %v245 = vld [vmem:[#allocation2 + $0x58] sm:$0xff]
  %v246 = vld [vmem:[#allocation2 + $0x60] sm:$0xff]
  %v247 = vld [vmem:[#allocation2 + $0x68] sm:$0xff]
  %v248 = vld [vmem:[#allocation2 + $0x70] sm:$0xff]
  %v249 = vld [vmem:[#allocation2 + $0x78] sm:$0xff]
  loop: start=0, step=1, limit=8
  $region21: #{colbert_forward.5} parent=0 // loop_pre_header
    _
  $region22: #{colbert_forward.5} parent=0 // loop_header
    %s251 = sphi 0, %s255
    %p252 = scmp.ge.s32.totalorder %s251, 8
    %v256 = vphi %v242, %v413
    %v257 = vphi %v243, %v414
    %v258 = vphi %v244, %v415
    %v259 = vphi %v245, %v416
    %v260 = vphi %v246, %v417
    %v261 = vphi %v247, %v418
    %v262 = vphi %v248, %v419
    %v263 = vphi %v249, %v420
  $region23: #{colbert_forward.5} parent=0 // loop_header_branch
    %254 = sbr.rel (%p252) target = $region27
  $region24: #{colbert_forward.5} parent=0 // loop_body
    %s264 = smul.u32 %s251, 32
    %s265 = smul.addr %s264, 4
    %s266 = scalar_lea.vmem %s1, %s265
    %v267 = vld [vmem:[%s266] sm:$0xff]
    %v268 = vld [vmem:[%s266 + $0x8] sm:$0xff]
    %v269 = vld [vmem:[%s266 + $0x10] sm:$0xff]
    %v270 = vld [vmem:[%s266 + $0x18] sm:$0xff]
    %v271 = vld [vmem:[%s266 + $0x20] sm:$0xff]
    %v272 = vld [vmem:[%s266 + $0x28] sm:$0xff]
    %v273 = vld [vmem:[%s266 + $0x30] sm:$0xff]
    %v274 = vld [vmem:[%s266 + $0x38] sm:$0xff]
    %v275 = vld [vmem:[%s266 + $0x40] sm:$0xff]
    %v276 = vld [vmem:[%s266 + $0x48] sm:$0xff]
    %v277 = vld [vmem:[%s266 + $0x50] sm:$0xff]
    %v278 = vld [vmem:[%s266 + $0x58] sm:$0xff]
    %v279 = vld [vmem:[%s266 + $0x60] sm:$0xff]
    %v280 = vld [vmem:[%s266 + $0x68] sm:$0xff]
    %v281 = vld [vmem:[%s266 + $0x70] sm:$0xff]
    %v282 = vld [vmem:[%s266 + $0x78] sm:$0xff]
    %v287 = vunpack.c.l.b16 %v238
    %v288 = vunpack.c.l.b16 %v239
    %v289 = vunpack.c.l.b16 %v240
    %v290 = vunpack.c.l.b16 %v241
    %v291 = vpack.c.b16 %v288, %v287
    %v292 = vpack.c.b16 %v290, %v289
    %v311 = vunpack.c.l.b16 %v267
    %v312 = vunpack.c.h.b16 %v267
    %v313 = vunpack.c.l.b16 %v268
    %v314 = vunpack.c.h.b16 %v268
    %v315 = vunpack.c.l.b16 %v269
    %v316 = vunpack.c.h.b16 %v269
    %v317 = vunpack.c.l.b16 %v270
    %v318 = vunpack.c.h.b16 %v270
    %v319 = vunpack.c.l.b16 %v271
    %v320 = vunpack.c.h.b16 %v271
    %v321 = vunpack.c.l.b16 %v272
    %v322 = vunpack.c.h.b16 %v272
    %v323 = vunpack.c.l.b16 %v273
    %v324 = vunpack.c.h.b16 %v273
    %v325 = vunpack.c.l.b16 %v274
    %v326 = vunpack.c.h.b16 %v274
    %v327 = vunpack.c.l.b16 %v275
    %v328 = vunpack.c.h.b16 %v275
    %v329 = vunpack.c.l.b16 %v276
    %v330 = vunpack.c.h.b16 %v276
    %v331 = vunpack.c.l.b16 %v277
    %v332 = vunpack.c.h.b16 %v277
    %v333 = vunpack.c.l.b16 %v278
    %v334 = vunpack.c.h.b16 %v278
    %v335 = vunpack.c.l.b16 %v279
    %v336 = vunpack.c.h.b16 %v279
    %v337 = vunpack.c.l.b16 %v280
    %v338 = vunpack.c.h.b16 %v280
    %v339 = vunpack.c.l.b16 %v281
    %v340 = vunpack.c.h.b16 %v281
    %v341 = vunpack.c.l.b16 %v282
    %v342 = vunpack.c.h.b16 %v282
    %v343 = vpack.c.b16 %v313, %v311
    %v344 = vpack.c.b16 %v314, %v312
    %v345 = vpack.c.b16 %v317, %v315
    %v346 = vpack.c.b16 %v318, %v316
    %v347 = vpack.c.b16 %v321, %v319
    %v348 = vpack.c.b16 %v322, %v320
    %v349 = vpack.c.b16 %v325, %v323
    %v350 = vpack.c.b16 %v326, %v324
    %v351 = vpack.c.b16 %v329, %v327
    %v352 = vpack.c.b16 %v330, %v328
    %v353 = vpack.c.b16 %v333, %v331
    %v354 = vpack.c.b16 %v334, %v332
    %v355 = vpack.c.b16 %v337, %v335
    %v356 = vpack.c.b16 %v338, %v336
    %v357 = vpack.c.b16 %v341, %v339
    %v358 = vpack.c.b16 %v342, %v340
    %375 = vmatpush.bf16.msra.mxu0 %v357
    %376 = vmatpush.bf16.msra.mxu0 %v355
    %377 = vmatpush.bf16.msra.mxu0 %v353
    %378 = vmatpush.bf16.msra.mxu0 %v351
    %379 = vmatpush.bf16.msra.mxu0 %v349
    %380 = vmatpush.bf16.msra.mxu0 %v347
    %381 = vmatpush.bf16.msra.mxu0 %v345
    %382 = vmatpush.bf16.msra.mxu0 %v343
    %383 = vmatmul.bf16.gmra.mxu0 %v291
    %v384 = vpop.f32.mrf.mxu0
    %v385 = vadd.f32 0.0, %v384
    %v386 = vpop.f32.mrf.mxu0
    %v387 = vadd.f32 0.0, %v386
    %388 = vmatmul.bf16.gmra.mxu0 %v292
    %v389 = vpop.f32.mrf.mxu0
    %v390 = vadd.f32 0.0, %v389
    %v391 = vpop.f32.mrf.mxu0
    %v392 = vadd.f32 0.0, %v391
    %393 = vdwg.mxu0
    %394 = vmatpush.bf16.msra.mxu0 %v358
    %395 = vmatpush.bf16.msra.mxu0 %v356
    %396 = vmatpush.bf16.msra.mxu0 %v354
    %397 = vmatpush.bf16.msra.mxu0 %v352
    %398 = vmatpush.bf16.msra.mxu0 %v350
    %399 = vmatpush.bf16.msra.mxu0 %v348
    %400 = vmatpush.bf16.msra.mxu0 %v346
    %401 = vmatpush.bf16.msra.mxu0 %v344
    %402 = vmatmul.bf16.gmra.mxu0 %v291
    %v403 = vpop.f32.mrf.mxu0
    %v404 = vadd.f32 0.0, %v403
    %v405 = vpop.f32.mrf.mxu0
    %v406 = vadd.f32 0.0, %v405
    %407 = vmatmul.bf16.gmra.mxu0 %v292
    %v408 = vpop.f32.mrf.mxu0
    %v409 = vadd.f32 0.0, %v408
    %v410 = vpop.f32.mrf.mxu0
    %v411 = vadd.f32 0.0, %v410
    %412 = vdwg.mxu0
    %v413 = vmax.f32 %v256, %v385
    %v414 = vmax.f32 %v257, %v404
    %v415 = vmax.f32 %v258, %v387
    %v416 = vmax.f32 %v259, %v406
    %v417 = vmax.f32 %v260, %v390
    %v418 = vmax.f32 %v261, %v409
    %v419 = vmax.f32 %v262, %v392
    %v420 = vmax.f32 %v263, %v411
  $region25: #{colbert_forward.5} parent=0 // loop_footer
    %s255 = sadd.s32 1, %s251
  $region26: #{colbert_forward.5} parent=0 // loop_footer_branch
    %250 = sbr.rel target = $region22
  $region27: #{colbert_forward.5} parent=0 // loop_exit
    _
  %421 = vst [vmem:[#allocation2 + $0x40] sm:$0xff] %v256
  %422 = vst [vmem:[#allocation2 + $0x48] sm:$0xff] %v257
  %423 = vst [vmem:[#allocation2 + $0x50] sm:$0xff] %v258
  %424 = vst [vmem:[#allocation2 + $0x58] sm:$0xff] %v259
  %425 = vst [vmem:[#allocation2 + $0x60] sm:$0xff] %v260
  %426 = vst [vmem:[#allocation2 + $0x68] sm:$0xff] %v261
  %427 = vst [vmem:[#allocation2 + $0x70] sm:$0xff] %v262
  %428 = vst [vmem:[#allocation2 + $0x78] sm:$0xff] %v263
  %v429 = vld [vmem:[%s0 + $0x20] sm:$0xf]
  %v430 = vld [vmem:[%s0 + $0x24] sm:$0xf]
  %v431 = vld [vmem:[%s0 + $0x28] sm:$0xf]
  %v432 = vld [vmem:[%s0 + $0x2c] sm:$0xf]
  %v433 = vld [vmem:[#allocation2 + $0x80] sm:$0xff]
  %v434 = vld [vmem:[#allocation2 + $0x88] sm:$0xff]
  %v435 = vld [vmem:[#allocation2 + $0x90] sm:$0xff]
  %v436 = vld [vmem:[#allocation2 + $0x98] sm:$0xff]
  %v437 = vld [vmem:[#allocation2 + $0xa0] sm:$0xff]
  %v438 = vld [vmem:[#allocation2 + $0xa8] sm:$0xff]
  %v439 = vld [vmem:[#allocation2 + $0xb0] sm:$0xff]
  %v440 = vld [vmem:[#allocation2 + $0xb8] sm:$0xff]
  loop: start=0, step=1, limit=8
  $region28: #{colbert_forward.5} parent=0 // loop_pre_header
    _
  $region29: #{colbert_forward.5} parent=0 // loop_header
    %s442 = sphi 0, %s446
    %p443 = scmp.ge.s32.totalorder %s442, 8
    %v447 = vphi %v433, %v604
    %v448 = vphi %v434, %v605
    %v449 = vphi %v435, %v606
    %v450 = vphi %v436, %v607
    %v451 = vphi %v437, %v608
    %v452 = vphi %v438, %v609
    %v453 = vphi %v439, %v610
    %v454 = vphi %v440, %v611
  $region30: #{colbert_forward.5} parent=0 // loop_header_branch
    %445 = sbr.rel (%p443) target = $region34
  $region31: #{colbert_forward.5} parent=0 // loop_body
    %s455 = smul.u32 %s442, 32
    %s456 = smul.addr %s455, 4
    %s457 = scalar_lea.vmem %s1, %s456
    %v458 = vld [vmem:[%s457] sm:$0xff]
    %v459 = vld [vmem:[%s457 + $0x8] sm:$0xff]
    %v460 = vld [vmem:[%s457 + $0x10] sm:$0xff]
    %v461 = vld [vmem:[%s457 + $0x18] sm:$0xff]
    %v462 = vld [vmem:[%s457 + $0x20] sm:$0xff]
    %v463 = vld [vmem:[%s457 + $0x28] sm:$0xff]
    %v464 = vld [vmem:[%s457 + $0x30] sm:$0xff]
    %v465 = vld [vmem:[%s457 + $0x38] sm:$0xff]
    %v466 = vld [vmem:[%s457 + $0x40] sm:$0xff]
    %v467 = vld [vmem:[%s457 + $0x48] sm:$0xff]
    %v468 = vld [vmem:[%s457 + $0x50] sm:$0xff]
    %v469 = vld [vmem:[%s457 + $0x58] sm:$0xff]
    %v470 = vld [vmem:[%s457 + $0x60] sm:$0xff]
    %v471 = vld [vmem:[%s457 + $0x68] sm:$0xff]
    %v472 = vld [vmem:[%s457 + $0x70] sm:$0xff]
    %v473 = vld [vmem:[%s457 + $0x78] sm:$0xff]
    %v478 = vunpack.c.l.b16 %v429
    %v479 = vunpack.c.l.b16 %v430
    %v480 = vunpack.c.l.b16 %v431
    %v481 = vunpack.c.l.b16 %v432
    %v482 = vpack.c.b16 %v479, %v478
    %v483 = vpack.c.b16 %v481, %v480
    %v502 = vunpack.c.l.b16 %v458
    %v503 = vunpack.c.h.b16 %v458
    %v504 = vunpack.c.l.b16 %v459
    %v505 = vunpack.c.h.b16 %v459
    %v506 = vunpack.c.l.b16 %v460
    %v507 = vunpack.c.h.b16 %v460
    %v508 = vunpack.c.l.b16 %v461
    %v509 = vunpack.c.h.b16 %v461
    %v510 = vunpack.c.l.b16 %v462
    %v511 = vunpack.c.h.b16 %v462
    %v512 = vunpack.c.l.b16 %v463
    %v513 = vunpack.c.h.b16 %v463
    %v514 = vunpack.c.l.b16 %v464
    %v515 = vunpack.c.h.b16 %v464
    %v516 = vunpack.c.l.b16 %v465
    %v517 = vunpack.c.h.b16 %v465
    %v518 = vunpack.c.l.b16 %v466
    %v519 = vunpack.c.h.b16 %v466
    %v520 = vunpack.c.l.b16 %v467
    %v521 = vunpack.c.h.b16 %v467
    %v522 = vunpack.c.l.b16 %v468
    %v523 = vunpack.c.h.b16 %v468
    %v524 = vunpack.c.l.b16 %v469
    %v525 = vunpack.c.h.b16 %v469
    %v526 = vunpack.c.l.b16 %v470
    %v527 = vunpack.c.h.b16 %v470
    %v528 = vunpack.c.l.b16 %v471
    %v529 = vunpack.c.h.b16 %v471
    %v530 = vunpack.c.l.b16 %v472
    %v531 = vunpack.c.h.b16 %v472
    %v532 = vunpack.c.l.b16 %v473
    %v533 = vunpack.c.h.b16 %v473
    %v534 = vpack.c.b16 %v504, %v502
    %v535 = vpack.c.b16 %v505, %v503
    %v536 = vpack.c.b16 %v508, %v506
    %v537 = vpack.c.b16 %v509, %v507
    %v538 = vpack.c.b16 %v512, %v510
    %v539 = vpack.c.b16 %v513, %v511
    %v540 = vpack.c.b16 %v516, %v514
    %v541 = vpack.c.b16 %v517, %v515
    %v542 = vpack.c.b16 %v520, %v518
    %v543 = vpack.c.b16 %v521, %v519
    %v544 = vpack.c.b16 %v524, %v522
    %v545 = vpack.c.b16 %v525, %v523
    %v546 = vpack.c.b16 %v528, %v526
    %v547 = vpack.c.b16 %v529, %v527
    %v548 = vpack.c.b16 %v532, %v530
    %v549 = vpack.c.b16 %v533, %v531
    %566 = vmatpush.bf16.msra.mxu0 %v548
    %567 = vmatpush.bf16.msra.mxu0 %v546
    %568 = vmatpush.bf16.msra.mxu0 %v544
    %569 = vmatpush.bf16.msra.mxu0 %v542
    %570 = vmatpush.bf16.msra.mxu0 %v540
    %571 = vmatpush.bf16.msra.mxu0 %v538
    %572 = vmatpush.bf16.msra.mxu0 %v536
    %573 = vmatpush.bf16.msra.mxu0 %v534
    %574 = vmatmul.bf16.gmra.mxu0 %v482
    %v575 = vpop.f32.mrf.mxu0
    %v576 = vadd.f32 0.0, %v575
    %v577 = vpop.f32.mrf.mxu0
    %v578 = vadd.f32 0.0, %v577
    %579 = vmatmul.bf16.gmra.mxu0 %v483
    %v580 = vpop.f32.mrf.mxu0
    %v581 = vadd.f32 0.0, %v580
    %v582 = vpop.f32.mrf.mxu0
    %v583 = vadd.f32 0.0, %v582
    %584 = vdwg.mxu0
    %585 = vmatpush.bf16.msra.mxu0 %v549
    %586 = vmatpush.bf16.msra.mxu0 %v547
    %587 = vmatpush.bf16.msra.mxu0 %v545
    %588 = vmatpush.bf16.msra.mxu0 %v543
    %589 = vmatpush.bf16.msra.mxu0 %v541
    %590 = vmatpush.bf16.msra.mxu0 %v539
    %591 = vmatpush.bf16.msra.mxu0 %v537
    %592 = vmatpush.bf16.msra.mxu0 %v535
    %593 = vmatmul.bf16.gmra.mxu0 %v482
    %v594 = vpop.f32.mrf.mxu0
    %v595 = vadd.f32 0.0, %v594
    %v596 = vpop.f32.mrf.mxu0
    %v597 = vadd.f32 0.0, %v596
    %598 = vmatmul.bf16.gmra.mxu0 %v483
    %v599 = vpop.f32.mrf.mxu0
    %v600 = vadd.f32 0.0, %v599
    %v601 = vpop.f32.mrf.mxu0
    %v602 = vadd.f32 0.0, %v601
    %603 = vdwg.mxu0
    %v604 = vmax.f32 %v447, %v576
    %v605 = vmax.f32 %v448, %v595
    %v606 = vmax.f32 %v449, %v578
    %v607 = vmax.f32 %v450, %v597
    %v608 = vmax.f32 %v451, %v581
    %v609 = vmax.f32 %v452, %v600
    %v610 = vmax.f32 %v453, %v583
    %v611 = vmax.f32 %v454, %v602
  $region32: #{colbert_forward.5} parent=0 // loop_footer
    %s446 = sadd.s32 1, %s442
  $region33: #{colbert_forward.5} parent=0 // loop_footer_branch
    %441 = sbr.rel target = $region29
  $region34: #{colbert_forward.5} parent=0 // loop_exit
    _
  %612 = vst [vmem:[#allocation2 + $0x80] sm:$0xff] %v447
  %613 = vst [vmem:[#allocation2 + $0x88] sm:$0xff] %v448
  %614 = vst [vmem:[#allocation2 + $0x90] sm:$0xff] %v449
  %615 = vst [vmem:[#allocation2 + $0x98] sm:$0xff] %v450
  %616 = vst [vmem:[#allocation2 + $0xa0] sm:$0xff] %v451
  %617 = vst [vmem:[#allocation2 + $0xa8] sm:$0xff] %v452
  %618 = vst [vmem:[#allocation2 + $0xb0] sm:$0xff] %v453
  %619 = vst [vmem:[#allocation2 + $0xb8] sm:$0xff] %v454
  %v620 = vld [vmem:[%s0 + $0x30] sm:$0xf]
  %v621 = vld [vmem:[%s0 + $0x34] sm:$0xf]
  %v622 = vld [vmem:[%s0 + $0x38] sm:$0xf]
  %v623 = vld [vmem:[%s0 + $0x3c] sm:$0xf]
  %v624 = vld [vmem:[#allocation2 + $0xc0] sm:$0xff]
  %v625 = vld [vmem:[#allocation2 + $0xc8] sm:$0xff]
  %v626 = vld [vmem:[#allocation2 + $0xd0] sm:$0xff]
  %v627 = vld [vmem:[#allocation2 + $0xd8] sm:$0xff]
  %v628 = vld [vmem:[#allocation2 + $0xe0] sm:$0xff]
  %v629 = vld [vmem:[#allocation2 + $0xe8] sm:$0xff]
  %v630 = vld [vmem:[#allocation2 + $0xf0] sm:$0xff]
  %v631 = vld [vmem:[#allocation2 + $0xf8] sm:$0xff]
  loop: start=0, step=1, limit=8
  $region35: #{colbert_forward.5} parent=0 // loop_pre_header
    _
  $region36: #{colbert_forward.5} parent=0 // loop_header
    %s633 = sphi 0, %s637
    %p634 = scmp.ge.s32.totalorder %s633, 8
    %v638 = vphi %v624, %v795
    %v639 = vphi %v625, %v796
    %v640 = vphi %v626, %v797
    %v641 = vphi %v627, %v798
    %v642 = vphi %v628, %v799
    %v643 = vphi %v629, %v800
    %v644 = vphi %v630, %v801
    %v645 = vphi %v631, %v802
  $region37: #{colbert_forward.5} parent=0 // loop_header_branch
    %636 = sbr.rel (%p634) target = $region41
  $region38: #{colbert_forward.5} parent=0 // loop_body
    %s646 = smul.u32 %s633, 32
    %s647 = smul.addr %s646, 4
    %s648 = scalar_lea.vmem %s1, %s647
    %v649 = vld [vmem:[%s648] sm:$0xff]
    %v650 = vld [vmem:[%s648 + $0x8] sm:$0xff]
    %v651 = vld [vmem:[%s648 + $0x10] sm:$0xff]
    %v652 = vld [vmem:[%s648 + $0x18] sm:$0xff]
    %v653 = vld [vmem:[%s648 + $0x20] sm:$0xff]
    %v654 = vld [vmem:[%s648 + $0x28] sm:$0xff]
    %v655 = vld [vmem:[%s648 + $0x30] sm:$0xff]
    %v656 = vld [vmem:[%s648 + $0x38] sm:$0xff]
    %v657 = vld [vmem:[%s648 + $0x40] sm:$0xff]
    %v658 = vld [vmem:[%s648 + $0x48] sm:$0xff]
    %v659 = vld [vmem:[%s648 + $0x50] sm:$0xff]
    %v660 = vld [vmem:[%s648 + $0x58] sm:$0xff]
    %v661 = vld [vmem:[%s648 + $0x60] sm:$0xff]
    %v662 = vld [vmem:[%s648 + $0x68] sm:$0xff]
    %v663 = vld [vmem:[%s648 + $0x70] sm:$0xff]
    %v664 = vld [vmem:[%s648 + $0x78] sm:$0xff]
    %v669 = vunpack.c.l.b16 %v620
    %v670 = vunpack.c.l.b16 %v621
    %v671 = vunpack.c.l.b16 %v622
    %v672 = vunpack.c.l.b16 %v623
    %v673 = vpack.c.b16 %v670, %v669
    %v674 = vpack.c.b16 %v672, %v671
    %v693 = vunpack.c.l.b16 %v649
    %v694 = vunpack.c.h.b16 %v649
    %v695 = vunpack.c.l.b16 %v650
    %v696 = vunpack.c.h.b16 %v650
    %v697 = vunpack.c.l.b16 %v651
    %v698 = vunpack.c.h.b16 %v651
    %v699 = vunpack.c.l.b16 %v652
    %v700 = vunpack.c.h.b16 %v652
    %v701 = vunpack.c.l.b16 %v653
    %v702 = vunpack.c.h.b16 %v653
    %v703 = vunpack.c.l.b16 %v654
    %v704 = vunpack.c.h.b16 %v654
    %v705 = vunpack.c.l.b16 %v655
    %v706 = vunpack.c.h.b16 %v655
    %v707 = vunpack.c.l.b16 %v656
    %v708 = vunpack.c.h.b16 %v656
    %v709 = vunpack.c.l.b16 %v657
    %v710 = vunpack.c.h.b16 %v657
    %v711 = vunpack.c.l.b16 %v658
    %v712 = vunpack.c.h.b16 %v658
    %v713 = vunpack.c.l.b16 %v659
    %v714 = vunpack.c.h.b16 %v659
    %v715 = vunpack.c.l.b16 %v660
    %v716 = vunpack.c.h.b16 %v660
    %v717 = vunpack.c.l.b16 %v661
    %v718 = vunpack.c.h.b16 %v661
    %v719 = vunpack.c.l.b16 %v662
    %v720 = vunpack.c.h.b16 %v662
    %v721 = vunpack.c.l.b16 %v663
    %v722 = vunpack.c.h.b16 %v663
    %v723 = vunpack.c.l.b16 %v664
    %v724 = vunpack.c.h.b16 %v664
    %v725 = vpack.c.b16 %v695, %v693
    %v726 = vpack.c.b16 %v696, %v694
    %v727 = vpack.c.b16 %v699, %v697
    %v728 = vpack.c.b16 %v700, %v698
    %v729 = vpack.c.b16 %v703, %v701
    %v730 = vpack.c.b16 %v704, %v702
    %v731 = vpack.c.b16 %v707, %v705
    %v732 = vpack.c.b16 %v708, %v706
    %v733 = vpack.c.b16 %v711, %v709
    %v734 = vpack.c.b16 %v712, %v710
    %v735 = vpack.c.b16 %v715, %v713
    %v736 = vpack.c.b16 %v716, %v714
    %v737 = vpack.c.b16 %v719, %v717
    %v738 = vpack.c.b16 %v720, %v718
    %v739 = vpack.c.b16 %v723, %v721
    %v740 = vpack.c.b16 %v724, %v722
    %757 = vmatpush.bf16.msra.mxu0 %v739
    %758 = vmatpush.bf16.msra.mxu0 %v737
    %759 = vmatpush.bf16.msra.mxu0 %v735
    %760 = vmatpush.bf16.msra.mxu0 %v733
    %761 = vmatpush.bf16.msra.mxu0 %v731
    %762 = vmatpush.bf16.msra.mxu0 %v729
    %763 = vmatpush.bf16.msra.mxu0 %v727
    %764 = vmatpush.bf16.msra.mxu0 %v725
    %765 = vmatmul.bf16.gmra.mxu0 %v673
    %v766 = vpop.f32.mrf.mxu0
    %v767 = vadd.f32 0.0, %v766
    %v768 = vpop.f32.mrf.mxu0
    %v769 = vadd.f32 0.0, %v768
    %770 = vmatmul.bf16.gmra.mxu0 %v674
    %v771 = vpop.f32.mrf.mxu0
    %v772 = vadd.f32 0.0, %v771
    %v773 = vpop.f32.mrf.mxu0
    %v774 = vadd.f32 0.0, %v773
    %775 = vdwg.mxu0
    %776 = vmatpush.bf16.msra.mxu0 %v740
    %777 = vmatpush.bf16.msra.mxu0 %v738
    %778 = vmatpush.bf16.msra.mxu0 %v736
    %779 = vmatpush.bf16.msra.mxu0 %v734
    %780 = vmatpush.bf16.msra.mxu0 %v732
    %781 = vmatpush.bf16.msra.mxu0 %v730
    %782 = vmatpush.bf16.msra.mxu0 %v728
    %783 = vmatpush.bf16.msra.mxu0 %v726
    %784 = vmatmul.bf16.gmra.mxu0 %v673
    %v785 = vpop.f32.mrf.mxu0
    %v786 = vadd.f32 0.0, %v785
    %v787 = vpop.f32.mrf.mxu0
    %v788 = vadd.f32 0.0, %v787
    %789 = vmatmul.bf16.gmra.mxu0 %v674
    %v790 = vpop.f32.mrf.mxu0
    %v791 = vadd.f32 0.0, %v790
    %v792 = vpop.f32.mrf.mxu0
    %v793 = vadd.f32 0.0, %v792
    %794 = vdwg.mxu0
    %v795 = vmax.f32 %v638, %v767
    %v796 = vmax.f32 %v639, %v786
    %v797 = vmax.f32 %v640, %v769
    %v798 = vmax.f32 %v641, %v788
    %v799 = vmax.f32 %v642, %v772
    %v800 = vmax.f32 %v643, %v791
    %v801 = vmax.f32 %v644, %v774
    %v802 = vmax.f32 %v645, %v793
  $region39: #{colbert_forward.5} parent=0 // loop_footer
    %s637 = sadd.s32 1, %s633
  $region40: #{colbert_forward.5} parent=0 // loop_footer_branch
    %632 = sbr.rel target = $region36
  $region41: #{colbert_forward.5} parent=0 // loop_exit
    _
  %803 = vst [vmem:[#allocation2 + $0xc0] sm:$0xff] %v638
  %804 = vst [vmem:[#allocation2 + $0xc8] sm:$0xff] %v639
  %805 = vst [vmem:[#allocation2 + $0xd0] sm:$0xff] %v640
  %806 = vst [vmem:[#allocation2 + $0xd8] sm:$0xff] %v641
  %807 = vst [vmem:[#allocation2 + $0xe0] sm:$0xff] %v642
  %808 = vst [vmem:[#allocation2 + $0xe8] sm:$0xff] %v643
  %809 = vst [vmem:[#allocation2 + $0xf0] sm:$0xff] %v644
  %810 = vst [vmem:[#allocation2 + $0xf8] sm:$0xff] %v645
  // Predicated region
  $region42: #{colbert_forward.5} parent=0 // pred_check
    %p811 = pneg %p11
  $region43: #{colbert_forward.5} parent=0 // pred_check_branch
    %813 = sbr.rel (%p811) target = $region45
  $region44: #{colbert_forward.5} parent=0 // pred_region
    %v814 = vld [vmem:[#allocation2] sm:$0xff]
    %v815 = vld [vmem:[#allocation2 + $0x8] sm:$0xff]
    %v816 = vld [vmem:[#allocation2 + $0x10] sm:$0xff]
    %v817 = vld [vmem:[#allocation2 + $0x18] sm:$0xff]
    %v818 = vld [vmem:[#allocation2 + $0x20] sm:$0xff]
    %v819 = vld [vmem:[#allocation2 + $0x28] sm:$0xff]
    %v820 = vld [vmem:[#allocation2 + $0x30] sm:$0xff]
    %v821 = vld [vmem:[#allocation2 + $0x38] sm:$0xff]
    %v822 = vld [vmem:[#allocation2 + $0x40] sm:$0xff]
    %v823 = vld [vmem:[#allocation2 + $0x48] sm:$0xff]
    %v824 = vld [vmem:[#allocation2 + $0x50] sm:$0xff]
    %v825 = vld [vmem:[#allocation2 + $0x58] sm:$0xff]
    %v826 = vld [vmem:[#allocation2 + $0x60] sm:$0xff]
    %v827 = vld [vmem:[#allocation2 + $0x68] sm:$0xff]
    %v828 = vld [vmem:[#allocation2 + $0x70] sm:$0xff]
    %v829 = vld [vmem:[#allocation2 + $0x78] sm:$0xff]
    %v830 = vld [vmem:[#allocation2 + $0x80] sm:$0xff]
    %v831 = vld [vmem:[#allocation2 + $0x88] sm:$0xff]
    %v832 = vld [vmem:[#allocation2 + $0x90] sm:$0xff]
    %v833 = vld [vmem:[#allocation2 + $0x98] sm:$0xff]
    %v834 = vld [vmem:[#allocation2 + $0xa0] sm:$0xff]
    %v835 = vld [vmem:[#allocation2 + $0xa8] sm:$0xff]
    %v836 = vld [vmem:[#allocation2 + $0xb0] sm:$0xff]
    %v837 = vld [vmem:[#allocation2 + $0xb8] sm:$0xff]
    %v838 = vld [vmem:[#allocation2 + $0xc0] sm:$0xff]
    %v839 = vld [vmem:[#allocation2 + $0xc8] sm:$0xff]
    %v840 = vld [vmem:[#allocation2 + $0xd0] sm:$0xff]
    %v841 = vld [vmem:[#allocation2 + $0xd8] sm:$0xff]
    %v842 = vld [vmem:[#allocation2 + $0xe0] sm:$0xff]
    %v843 = vld [vmem:[#allocation2 + $0xe8] sm:$0xff]
    %v844 = vld [vmem:[#allocation2 + $0xf0] sm:$0xff]
    %v845 = vld [vmem:[#allocation2 + $0xf8] sm:$0xff]
    %v846 = vrot.slane %v814, 4
    %v847 = vadd.f32 %v814, %v846
    %v848 = vrot.slane %v847, 2
    %v849 = vadd.f32 %v847, %v848
    %v850 = vrot.slane %v849, 1
    %v851 = vadd.f32 %v849, %v850
    %v852 = vrot.slane %v815, 4
    %v853 = vadd.f32 %v815, %v852
    %v854 = vrot.slane %v853, 2
    %v855 = vadd.f32 %v853, %v854
    %v856 = vrot.slane %v855, 1
    %v857 = vadd.f32 %v855, %v856
    %v858 = vrot.slane %v816, 4
    %v859 = vadd.f32 %v816, %v858
    %v860 = vrot.slane %v859, 2
    %v861 = vadd.f32 %v859, %v860
    %v862 = vrot.slane %v861, 1
    %v863 = vadd.f32 %v861, %v862
    %v864 = vrot.slane %v817, 4
    %v865 = vadd.f32 %v817, %v864
    %v866 = vrot.slane %v865, 2
    %v867 = vadd.f32 %v865, %v866
    %v868 = vrot.slane %v867, 1
    %v869 = vadd.f32 %v867, %v868
    %v870 = vrot.slane %v818, 4
    %v871 = vadd.f32 %v818, %v870
    %v872 = vrot.slane %v871, 2
    %v873 = vadd.f32 %v871, %v872
    %v874 = vrot.slane %v873, 1
    %v875 = vadd.f32 %v873, %v874
    %v876 = vrot.slane %v819, 4
    %v877 = vadd.f32 %v819, %v876
    %v878 = vrot.slane %v877, 2
    %v879 = vadd.f32 %v877, %v878
    %v880 = vrot.slane %v879, 1
    %v881 = vadd.f32 %v879, %v880
    %v882 = vrot.slane %v820, 4
    %v883 = vadd.f32 %v820, %v882
    %v884 = vrot.slane %v883, 2
    %v885 = vadd.f32 %v883, %v884
    %v886 = vrot.slane %v885, 1
    %v887 = vadd.f32 %v885, %v886
    %v888 = vrot.slane %v821, 4
    %v889 = vadd.f32 %v821, %v888
    %v890 = vrot.slane %v889, 2
    %v891 = vadd.f32 %v889, %v890
    %v892 = vrot.slane %v891, 1
    %v893 = vadd.f32 %v891, %v892
    %v894 = vrot.slane %v822, 4
    %v895 = vadd.f32 %v822, %v894
    %v896 = vrot.slane %v895, 2
    %v897 = vadd.f32 %v895, %v896
    %v898 = vrot.slane %v897, 1
    %v899 = vadd.f32 %v897, %v898
    %v900 = vrot.slane %v823, 4
    %v901 = vadd.f32 %v823, %v900
    %v902 = vrot.slane %v901, 2
    %v903 = vadd.f32 %v901, %v902
    %v904 = vrot.slane %v903, 1
    %v905 = vadd.f32 %v903, %v904
    %v906 = vrot.slane %v824, 4
    %v907 = vadd.f32 %v824, %v906
    %v908 = vrot.slane %v907, 2
    %v909 = vadd.f32 %v907, %v908
    %v910 = vrot.slane %v909, 1
    %v911 = vadd.f32 %v909, %v910
    %v912 = vrot.slane %v825, 4
    %v913 = vadd.f32 %v825, %v912
    %v914 = vrot.slane %v913, 2
    %v915 = vadd.f32 %v913, %v914
    %v916 = vrot.slane %v915, 1
    %v917 = vadd.f32 %v915, %v916
    %v918 = vrot.slane %v826, 4
    %v919 = vadd.f32 %v826, %v918
    %v920 = vrot.slane %v919, 2
    %v921 = vadd.f32 %v919, %v920
    %v922 = vrot.slane %v921, 1
    %v923 = vadd.f32 %v921, %v922
    %v924 = vrot.slane %v827, 4
    %v925 = vadd.f32 %v827, %v924
    %v926 = vrot.slane %v925, 2
    %v927 = vadd.f32 %v925, %v926
    %v928 = vrot.slane %v927, 1
    %v929 = vadd.f32 %v927, %v928
    %v930 = vrot.slane %v828, 4
    %v931 = vadd.f32 %v828, %v930
    %v932 = vrot.slane %v931, 2
    %v933 = vadd.f32 %v931, %v932
    %v934 = vrot.slane %v933, 1
    %v935 = vadd.f32 %v933, %v934
    %v936 = vrot.slane %v829, 4
    %v937 = vadd.f32 %v829, %v936
    %v938 = vrot.slane %v937, 2
    %v939 = vadd.f32 %v937, %v938
    %v940 = vrot.slane %v939, 1
    %v941 = vadd.f32 %v939, %v940
    %v942 = vrot.slane %v830, 4
    %v943 = vadd.f32 %v830, %v942
    %v944 = vrot.slane %v943, 2
    %v945 = vadd.f32 %v943, %v944
    %v946 = vrot.slane %v945, 1
    %v947 = vadd.f32 %v945, %v946
    %v948 = vrot.slane %v831, 4
    %v949 = vadd.f32 %v831, %v948
    %v950 = vrot.slane %v949, 2
    %v951 = vadd.f32 %v949, %v950
    %v952 = vrot.slane %v951, 1
    %v953 = vadd.f32 %v951, %v952
    %v954 = vrot.slane %v832, 4
    %v955 = vadd.f32 %v832, %v954
    %v956 = vrot.slane %v955, 2
    %v957 = vadd.f32 %v955, %v956
    %v958 = vrot.slane %v957, 1
    %v959 = vadd.f32 %v957, %v958
    %v960 = vrot.slane %v833, 4
    %v961 = vadd.f32 %v833, %v960
    %v962 = vrot.slane %v961, 2
    %v963 = vadd.f32 %v961, %v962
    %v964 = vrot.slane %v963, 1
    %v965 = vadd.f32 %v963, %v964
    %v966 = vrot.slane %v834, 4
    %v967 = vadd.f32 %v834, %v966
    %v968 = vrot.slane %v967, 2
    %v969 = vadd.f32 %v967, %v968
    %v970 = vrot.slane %v969, 1
    %v971 = vadd.f32 %v969, %v970
    %v972 = vrot.slane %v835, 4
    %v973 = vadd.f32 %v835, %v972
    %v974 = vrot.slane %v973, 2
    %v975 = vadd.f32 %v973, %v974
    %v976 = vrot.slane %v975, 1
    %v977 = vadd.f32 %v975, %v976
    %v978 = vrot.slane %v836, 4
    %v979 = vadd.f32 %v836, %v978
    %v980 = vrot.slane %v979, 2
    %v981 = vadd.f32 %v979, %v980
    %v982 = vrot.slane %v981, 1
    %v983 = vadd.f32 %v981, %v982
    %v984 = vrot.slane %v837, 4
    %v985 = vadd.f32 %v837, %v984
    %v986 = vrot.slane %v985, 2
    %v987 = vadd.f32 %v985, %v986
    %v988 = vrot.slane %v987, 1
    %v989 = vadd.f32 %v987, %v988
    %v990 = vrot.slane %v838, 4
    %v991 = vadd.f32 %v838, %v990
    %v992 = vrot.slane %v991, 2
    %v993 = vadd.f32 %v991, %v992
    %v994 = vrot.slane %v993, 1
    %v995 = vadd.f32 %v993, %v994
    %v996 = vrot.slane %v839, 4
    %v997 = vadd.f32 %v839, %v996
    %v998 = vrot.slane %v997, 2
    %v999 = vadd.f32 %v997, %v998
    %v1000 = vrot.slane %v999, 1
    %v1001 = vadd.f32 %v999, %v1000
    %v1002 = vrot.slane %v840, 4
    %v1003 = vadd.f32 %v840, %v1002
    %v1004 = vrot.slane %v1003, 2
    %v1005 = vadd.f32 %v1003, %v1004
    %v1006 = vrot.slane %v1005, 1
    %v1007 = vadd.f32 %v1005, %v1006
    %v1008 = vrot.slane %v841, 4
    %v1009 = vadd.f32 %v841, %v1008
    %v1010 = vrot.slane %v1009, 2
    %v1011 = vadd.f32 %v1009, %v1010
    %v1012 = vrot.slane %v1011, 1
    %v1013 = vadd.f32 %v1011, %v1012
    %v1014 = vrot.slane %v842, 4
    %v1015 = vadd.f32 %v842, %v1014
    %v1016 = vrot.slane %v1015, 2
    %v1017 = vadd.f32 %v1015, %v1016
    %v1018 = vrot.slane %v1017, 1
    %v1019 = vadd.f32 %v1017, %v1018
    %v1020 = vrot.slane %v843, 4
    %v1021 = vadd.f32 %v843, %v1020
    %v1022 = vrot.slane %v1021, 2
    %v1023 = vadd.f32 %v1021, %v1022
    %v1024 = vrot.slane %v1023, 1
    %v1025 = vadd.f32 %v1023, %v1024
    %v1026 = vrot.slane %v844, 4
    %v1027 = vadd.f32 %v844, %v1026
    %v1028 = vrot.slane %v1027, 2
    %v1029 = vadd.f32 %v1027, %v1028
    %v1030 = vrot.slane %v1029, 1
    %v1031 = vadd.f32 %v1029, %v1030
    %v1032 = vrot.slane %v845, 4
    %v1033 = vadd.f32 %v845, %v1032
    %v1034 = vrot.slane %v1033, 2
    %v1035 = vadd.f32 %v1033, %v1034
    %v1036 = vrot.slane %v1035, 1
    %v1037 = vadd.f32 %v1035, %v1036
    %vm1070 = vcmask 1041409
    %v1071 = vsel %vm1070, %v863, %v851
    %vm1072 = vcmask 1042434
    %v1073 = vsel %vm1072, %v875, %v1071
    %vm1074 = vcmask 1043459
    %v1075 = vsel %vm1074, %v887, %v1073
    %vm1076 = vcmask 1044484
    %v1077 = vsel %vm1076, %v899, %v1075
    %vm1078 = vcmask 1045509
    %v1079 = vsel %vm1078, %v911, %v1077
    %vm1080 = vcmask 1046534
    %v1081 = vsel %vm1080, %v923, %v1079
    %vm1082 = vcmask 1047559
    %v1083 = vsel %vm1082, %v935, %v1081
    %v1084 = vsel %vm1070, %v869, %v857
    %v1085 = vsel %vm1072, %v881, %v1084
    %v1086 = vsel %vm1074, %v893, %v1085
    %v1087 = vsel %vm1076, %v905, %v1086
    %v1088 = vsel %vm1078, %v917, %v1087
    %v1089 = vsel %vm1080, %v929, %v1088
    %v1090 = vsel %vm1082, %v941, %v1089
    %v1091 = vsel %vm1070, %v959, %v947
    %v1092 = vsel %vm1072, %v971, %v1091
    %v1093 = vsel %vm1074, %v983, %v1092
    %v1094 = vsel %vm1076, %v995, %v1093
    %v1095 = vsel %vm1078, %v1007, %v1094
    %v1096 = vsel %vm1080, %v1019, %v1095
    %v1097 = vsel %vm1082, %v1031, %v1096
    %v1098 = vsel %vm1070, %v965, %v953
    %v1099 = vsel %vm1072, %v977, %v1098
    %v1100 = vsel %vm1074, %v989, %v1099
    %v1101 = vsel %vm1076, %v1001, %v1100
    %v1102 = vsel %vm1078, %v1013, %v1101
    %v1103 = vsel %vm1080, %v1025, %v1102
    %v1104 = vsel %vm1082, %v1037, %v1103
    %1109 = vst [vmem:[%s2] sm:$0xff] %v1083
    %1110 = vst [vmem:[%s2 + $0x8] sm:$0xff] %v1090
    %1111 = vst [vmem:[%s2 + $0x10] sm:$0xff] %v1097
    %1112 = vst [vmem:[%s2 + $0x18] sm:$0xff] %v1104
  $region45: #{colbert_forward.5} parent=0 // pred_fallthru
    _
  // Predicated region
  $region46: #{colbert_forward.5} parent=0 // pred_check
    _
  $region47: #{colbert_forward.5} parent=0 // pred_check_branch
    %1114 = sbr.rel (0) target = $region49
  $region48: #{colbert_forward.5} parent=0 // pred_region
    _
  $region49: #{colbert_forward.5} parent=0 // pred_fallthru
    _
  // Predicated region
  $region50: #{colbert_forward.5} parent=0 // pred_check
    _
  $region51: #{colbert_forward.5} parent=0 // pred_check_branch
    %1116 = sbr.rel (0) target = $region53
  $region52: #{colbert_forward.5} parent=0 // pred_region
    _
  $region53: #{colbert_forward.5} parent=0 // pred_fallthru
    _

</llo_original>
